<compile_context>
chip_gen: v6e
topology: v6e:2x2x1
jax: 0.10.0
libtpu: 0.0.40
codegen_flags: <defaults>
</compile_context>

<pallas_src>
import functools

import jax
import jax.numpy as jnp
import numpy as np
from jax.experimental import pallas as pl
from jax.experimental.pallas import tpu as pltpu


def charcnn_fused_kernel(ids_ref, emb_ref, w_ref, b_ref, o_ref, *,
                         kernel_sizes, f_sizes, lane_pad):
    """Fused embedding gather + multi-width Conv1d + max-over-time + bias/ReLU.

    ids_ref : (tile_n, T) int32       char ids for this tile of N rows
    emb_ref : (V, E)      f32         embedding table (padding row zeroed)
    w_ref   : (E, K_all)  f32         all convs, all taps, packed tap-major:
                                      cols [base_j + k*F_j : +F_j] == w_j[k]
    b_ref   : (1, f_lane) f32         concat of biases, zero-padded to 128 lanes
    o_ref   : (tile_n, f_lane) f32    pooled output (lane-padded, pad stays 0)
    """
    tile_n, T = ids_ref.shape
    V, E = emb_ref.shape
    K_all = w_ref.shape[1]
    M = tile_n * T

    # ---- in-kernel embedding gather: ONE 2-D one-hot matmul on the MXU ----
    # (pad row of emb_ref is zero, so pad positions gather to zero -> identical
    # to the explicit `*= mask` in the PyTorch forward)
    ids = ids_ref[...]
    iota_v = jax.lax.broadcasted_iota(jnp.int32, (tile_n, T, V), 2)
    onehot = (ids[:, :, None] == iota_v).astype(jnp.float32)      # (tile_n,T,V)
    x2d = jnp.dot(onehot.reshape(M, V), emb_ref[...],
                  preferred_element_type=jnp.float32)              # (M, E)

    # ---- all taps of all convs in ONE 2-D matmul (no zero filters) ----
    y2d = jnp.dot(x2d, w_ref[...], preferred_element_type=jnp.float32)  # (M,K_all)
    y = y2d.reshape(tile_n, T, K_all)

    # ---- per conv: combine taps with static shifted slices, max over time ----
    maxes = []
    base = 0
    for ks, F in zip(kernel_sizes, f_sizes):
        t_out = T - ks + 1
        acc = y[:, 0:t_out, base:base + F]
        for k in range(1, ks):
            acc = acc + y[:, k:k + t_out, base + k * F: base + (k + 1) * F]
        maxes.append(jnp.max(acc, axis=1))                         # (tile_n, F)
        base += ks * F

    # zero-pad the pooled block (not the weights) up to the 128-lane store width
    if lane_pad:
        maxes.append(jnp.zeros((tile_n, lane_pad), jnp.float32))
    cat = jnp.concatenate(maxes, axis=1) if len(maxes) > 1 else maxes[0]

    # bias + ReLU after the max (exact); pad lanes stay exactly zero
    o_ref[...] = jnp.maximum(cat + b_ref[...], 0.0).astype(o_ref.dtype)


def char_cnn_forward(char_ids, emb_w, conv_ws, conv_bs, kernel_sizes, pad_idx,
                     seq_size, *, tile_n=512, vmem_limit_mb=48):
    """Full CharCNN.forward.

    char_ids: (B, seq_size, char_n_ctx) int32
    emb_w   : (V, E) f32
    conv_ws : list of (ks, E, F) f32   (w[k, e, f] == torch_conv.weight[f, e, k])
    conv_bs : list of (F,) f32
    returns : (B, seq_size, sum_j F_j) f32
    """
    B, S, T = char_ids.shape
    assert S == seq_size
    assert T >= max(int(k) for k in kernel_sizes), \
        "char_n_ctx must be >= the largest kernel size"
    N = B * S
    V, E = emb_w.shape

    # Zero the padding row of (a copy of) the table: exactly the
    # `char_embed_out *= mask` of the PyTorch forward, applied at gather time.
    emb_masked = emb_w.astype(jnp.float32).at[pad_idx].set(0.0)
    ids2d = char_ids.reshape(N, T).astype(jnp.int32)

    # Tile over N (multiple of 8).  Prefer >= 2 grid steps so v7x's two
    # TensorCores both get work when the grid axis is sharded ("parallel").
    n8 = -(-N // 8) * 8
    tile_n = max(8, (min(tile_n, n8) // 8) * 8)
    if tile_n >= n8 and n8 >= 16:
        tile_n = ((n8 // 2 + 7) // 8) * 8
    n_pad = -(-N // tile_n) * tile_n
    if n_pad != N:
        ids2d = jnp.pad(ids2d, ((0, n_pad - N), (0, 0)), constant_values=pad_idx)

    f_sizes = [int(w.shape[2]) for w in conv_ws]
    f_total = sum(f_sizes)
    f_lane = -(-f_total // 128) * 128
    lane_pad = f_lane - f_total

    # Pack ALL conv weights tap-major into one (E, sum_j ks_j*F_j) matrix:
    # columns [base_j + k*F_j : +F_j] hold w_j[k].  No zero filters.
    w_all = jnp.concatenate(
        [jnp.transpose(w.astype(jnp.float32), (1, 0, 2)).reshape(E, int(ks) * int(w.shape[2]))
         for ks, w in zip(kernel_sizes, conv_ws)], axis=1)
    k_all = int(w_all.shape[1])

    # One bias row, zero-padded to the lane-dense output width.
    b_all = jnp.concatenate([b.astype(jnp.float32) for b in conv_bs])
    b_all = jnp.pad(b_all, ((0, lane_pad),)).reshape(1, f_lane)

    kernel = functools.partial(
        charcnn_fused_kernel,
        kernel_sizes=tuple(int(k) for k in kernel_sizes),
        f_sizes=tuple(f_sizes),
        lane_pad=int(lane_pad))

    out = pl.pallas_call(
        kernel,
        out_shape=jax.ShapeDtypeStruct((n_pad, f_lane), jnp.float32),
        grid_spec=pltpu.PrefetchScalarGridSpec(
            num_scalar_prefetch=0,
            grid=(n_pad // tile_n,),
            in_specs=[
                pl.BlockSpec((tile_n, T), lambda i: (i, 0)),   # char ids (streamed)
                pl.BlockSpec((V, E), lambda i: (0, 0)),        # emb table (resident)
                pl.BlockSpec((E, k_all), lambda i: (0, 0)),    # packed conv weights
                pl.BlockSpec((1, f_lane), lambda i: (0, 0)),   # packed bias row
            ],
            out_specs=pl.BlockSpec((tile_n, f_lane), lambda i: (i, 0)),
        ),
        compiler_params=pltpu.CompilerParams(
            # N tiles are independent -> let v7x shard them over its 2 TCs.
            dimension_semantics=("parallel",),
            # Safe on v7x (64 MiB physical); raise on v5e/v6e (128 MiB) along
            # with tile_n if more per-step work is wanted.
            vmem_limit_bytes=vmem_limit_mb * 1024 * 1024,
        ),
    )(ids2d, emb_masked, w_all, b_all)

    return out[:N, :f_total].reshape(B, seq_size, f_total)


def ref_forward(char_ids, emb_w, conv_ws, conv_bs, kernel_sizes, pad_idx):
    """Pure-JAX reference mirroring the PyTorch module semantics."""
    B, S, T = char_ids.shape
    ids2d = char_ids.reshape(-1, T)
    mask = (ids2d != pad_idx).astype(jnp.float32)[:, :, None]
    x = jnp.take(emb_w, ids2d, axis=0).astype(jnp.float32) * mask
    outs = []
    for ks, w, b in zip(kernel_sizes, conv_ws, conv_bs):
        t_out = T - ks + 1
        acc = jnp.zeros((x.shape[0], t_out, w.shape[2]), jnp.float32)
        for k in range(ks):
            acc = acc + jnp.einsum("nte,ef->ntf", x[:, k:k + t_out, :], w[k])
        acc = jax.nn.relu(acc + b[None, None, :])
        outs.append(jnp.max(acc, axis=1))
    return jnp.concatenate(outs, axis=1).reshape(B, S, -1)


if __name__ == "__main__":
    # ---- config (mirrors the module's __init__ fields) ----
    batch = 2
    seq_size = 8                # config['n_ctx']
    char_n_ctx = 16             # config['char_n_ctx']
    char_vocab_size = 20        # config['char_vocab_size']
    char_emb_dim = 32           # config['char_emb_dim']
    char_num_filters = 32       # config['char_num_filters']
    char_kernel_sizes = [3, 5]  # config['char_kernel_sizes']
    char_padding_idx = 0        # config['char_padding_idx']

    key = jax.random.PRNGKey(0)
    k_emb, k_ids, *k_convs = jax.random.split(key, 2 + 2 * len(char_kernel_sizes))

    # embedding table; padding row zeroed like nn.Embedding(padding_idx=0)
    emb_w = 0.1 * jax.random.normal(k_emb, (char_vocab_size, char_emb_dim),
                                    dtype=jnp.float32)
    emb_w = emb_w.at[char_padding_idx].set(0.0)

    # conv params, stored tap-major (ks, E, F); w[k,e,f] == torch weight[f,e,k]
    conv_ws, conv_bs = [], []
    for j, ks in enumerate(char_kernel_sizes):
        kw = k_convs[2 * j]
        kb = k_convs[2 * j + 1]
        conv_ws.append(0.1 * jax.random.normal(
            kw, (ks, char_emb_dim, char_num_filters), dtype=jnp.float32))
        conv_bs.append(0.1 * jax.random.normal(
            kb, (char_num_filters,), dtype=jnp.float32))

    # char ids input: (B, seq, char_n_ctx); includes padding_idx=0 entries
    char_ids = jax.random.randint(
        k_ids, (batch, seq_size, char_n_ctx), 0, char_vocab_size, dtype=jnp.int32)

    out = char_cnn_forward(char_ids, emb_w, conv_ws, conv_bs,
                           char_kernel_sizes, char_padding_idx, seq_size)
    out = jax.block_until_ready(out)

    expected_last_dim = len(char_kernel_sizes) * char_num_filters
    assert out.shape == (batch, seq_size, expected_last_dim), out.shape

    ref = ref_forward(char_ids, emb_w, conv_ws, conv_bs,
                      char_kernel_sizes, char_padding_idx)
    np.testing.assert_allclose(np.asarray(out), np.asarray(ref),
                               rtol=1e-5, atol=1e-5)
    print("KERNEL_OK")
</pallas_src>

<mosaic_0001>
module attributes {stable_mosaic.version = 11 : i64} {
  func.func @charcnn_fused_kernel(%arg0: i32, %arg1: memref<8x16xi32, #tpu.memory_space<vmem>>, %arg2: memref<20x32xf32, #tpu.memory_space<vmem>>, %arg3: memref<32x256xf32, #tpu.memory_space<vmem>>, %arg4: memref<1x128xf32, #tpu.memory_space<vmem>>, %arg5: memref<8x128xf32, #tpu.memory_space<vmem>>) attributes {dimension_semantics = [#tpu.dimension_semantics<parallel>], iteration_bounds = array<i64: 2>, scalar_prefetch = 0 : i64, scratch_operands = 0 : i64, tpu.core_type = #tpu.core_type<tc>, window_params = [{transform_indices = @transform_0, window_bounds = array<i64: 8, 16>}, {pipeline_mode = #tpu.pipeline_mode<synchronous>, transform_indices = @transform_1, window_bounds = array<i64: 20, 32>}, {pipeline_mode = #tpu.pipeline_mode<synchronous>, transform_indices = @transform_2, window_bounds = array<i64: 32, 256>}, {pipeline_mode = #tpu.pipeline_mode<synchronous>, transform_indices = @transform_3, window_bounds = array<i64: 1, 128>}, {transform_indices = @transform_4, window_bounds = array<i64: 8, 128>}]} {
    %c0 = arith.constant 0 : index
    %c0_0 = arith.constant 0 : index
    %0 = vector.load %arg1[%c0, %c0_0] : memref<8x16xi32, #tpu.memory_space<vmem>>, vector<8x16xi32>
    %1 = tpu.iota {dimensions = array<i32: 2>} : vector<8x16x20xi32>
    %2 = vector.shape_cast %0 : vector<8x16xi32> to vector<8x16x1xi32>
    %3 = vector.broadcast %2 : vector<8x16x1xi32> to vector<8x16x20xi32>
    %4 = arith.cmpi eq, %3, %1 : vector<8x16x20xi32>
    %5 = arith.extui %4 : vector<8x16x20xi1> to vector<8x16x20xi32>
    %6 = arith.sitofp %5 : vector<8x16x20xi32> to vector<8x16x20xf32>
    %7 = vector.shape_cast %6 : vector<8x16x20xf32> to vector<128x20xf32>
    %c0_1 = arith.constant 0 : index
    %c0_2 = arith.constant 0 : index
    %8 = vector.load %arg2[%c0_1, %c0_2] : memref<20x32xf32, #tpu.memory_space<vmem>>, vector<20x32xf32>
    %cst = arith.constant dense<0.000000e+00> : vector<128x32xf32>
    %9 = tpu.matmul %7, %8, %cst {dimension_numbers = #tpu.dot_dimension_numbers<[1], [0], [0], [1], [0, 0, 1, 1], [], []>} : vector<128x20xf32>, vector<20x32xf32>, vector<128x32xf32> -> vector<128x32xf32>
    %c0_3 = arith.constant 0 : index
    %c0_4 = arith.constant 0 : index
    %10 = vector.load %arg3[%c0_3, %c0_4] : memref<32x256xf32, #tpu.memory_space<vmem>>, vector<32x256xf32>
    %cst_5 = arith.constant dense<0.000000e+00> : vector<128x256xf32>
    %11 = tpu.matmul %9, %10, %cst_5 {dimension_numbers = #tpu.dot_dimension_numbers<[1], [0], [0], [1], [0, 0, 1, 1], [], []>} : vector<128x32xf32>, vector<32x256xf32>, vector<128x256xf32> -> vector<128x256xf32>
    %12 = vector.shape_cast %11 : vector<128x256xf32> to vector<8x16x256xf32>
    %13 = vector.extract_strided_slice %12 {offsets = [0, 0, 0], sizes = [8, 14, 32], strides = [1, 1, 1]} : vector<8x16x256xf32> to vector<8x14x32xf32>
    %14 = vector.extract_strided_slice %12 {offsets = [0, 1, 32], sizes = [8, 14, 32], strides = [1, 1, 1]} : vector<8x16x256xf32> to vector<8x14x32xf32>
    %15 = arith.addf %13, %14 : vector<8x14x32xf32>
    %16 = vector.extract_strided_slice %12 {offsets = [0, 2, 64], sizes = [8, 14, 32], strides = [1, 1, 1]} : vector<8x16x256xf32> to vector<8x14x32xf32>
    %17 = arith.addf %15, %16 : vector<8x14x32xf32>
    %cst_6 = arith.constant dense<0xFF800000> : vector<8x32xf32>
    %18 = vector.multi_reduction <maximumf>, %17, %cst_6 [1] : vector<8x14x32xf32> to vector<8x32xf32>
    %19 = vector.extract_strided_slice %12 {offsets = [0, 0, 96], sizes = [8, 12, 32], strides = [1, 1, 1]} : vector<8x16x256xf32> to vector<8x12x32xf32>
    %20 = vector.extract_strided_slice %12 {offsets = [0, 1, 128], sizes = [8, 12, 32], strides = [1, 1, 1]} : vector<8x16x256xf32> to vector<8x12x32xf32>
    %21 = arith.addf %19, %20 : vector<8x12x32xf32>
    %22 = vector.extract_strided_slice %12 {offsets = [0, 2, 160], sizes = [8, 12, 32], strides = [1, 1, 1]} : vector<8x16x256xf32> to vector<8x12x32xf32>
    %23 = arith.addf %21, %22 : vector<8x12x32xf32>
    %24 = vector.extract_strided_slice %12 {offsets = [0, 3, 192], sizes = [8, 12, 32], strides = [1, 1, 1]} : vector<8x16x256xf32> to vector<8x12x32xf32>
    %25 = arith.addf %23, %24 : vector<8x12x32xf32>
    %26 = vector.extract_strided_slice %12 {offsets = [0, 4, 224], sizes = [8, 12, 32], strides = [1, 1, 1]} : vector<8x16x256xf32> to vector<8x12x32xf32>
    %27 = arith.addf %25, %26 : vector<8x12x32xf32>
    %cst_7 = arith.constant dense<0xFF800000> : vector<8x32xf32>
    %28 = vector.multi_reduction <maximumf>, %27, %cst_7 [1] : vector<8x12x32xf32> to vector<8x32xf32>
    %cst_8 = arith.constant 0.000000e+00 : f32
    %29 = vector.broadcast %cst_8 : f32 to vector<8x64xf32>
    %30 = tpu.concatenate %18, %28, %29 in 1 : vector<8x32xf32>, vector<8x32xf32>, vector<8x64xf32> -> vector<8x128xf32>
    %c0_9 = arith.constant 0 : index
    %c0_10 = arith.constant 0 : index
    %31 = vector.load %arg4[%c0_9, %c0_10] : memref<1x128xf32, #tpu.memory_space<vmem>>, vector<1x128xf32>
    %32 = vector.broadcast %31 : vector<1x128xf32> to vector<8x128xf32>
    %33 = arith.addf %30, %32 : vector<8x128xf32>
    %cst_11 = arith.constant 0.000000e+00 : f32
    %34 = vector.broadcast %cst_11 : f32 to vector<8x128xf32>
    %35 = arith.maximumf %33, %34 : vector<8x128xf32>
    %c0_12 = arith.constant 0 : index
    %c0_13 = arith.constant 0 : index
    %36 = vector.load %arg5[%c0_12, %c0_13] : memref<8x128xf32, #tpu.memory_space<vmem>>, vector<8x128xf32>
    tpu.vector_store %arg5[%c0_12, %c0_13], %35 {strides = array<i32>} : memref<8x128xf32, #tpu.memory_space<vmem>>, vector<8x128xf32>,
    return
  }
  func.func @transform_0(%arg0: i32) -> (i32, i32) {
    %c0_i32 = arith.constant 0 : i32
    %c0_i32_0 = arith.constant 0 : i32
    return %arg0, %c0_i32 : i32, i32
  }
  func.func @transform_1(%arg0: i32) -> (i32, i32) {
    %c0_i32 = arith.constant 0 : i32
    %c0_i32_0 = arith.constant 0 : i32
    %c0_i32_1 = arith.constant 0 : i32
    return %c0_i32, %c0_i32_0 : i32, i32
  }
  func.func @transform_2(%arg0: i32) -> (i32, i32) {
    %c0_i32 = arith.constant 0 : i32
    %c0_i32_0 = arith.constant 0 : i32
    %c0_i32_1 = arith.constant 0 : i32
    return %c0_i32, %c0_i32_0 : i32, i32
  }
  func.func @transform_3(%arg0: i32) -> (i32, i32) {
    %c0_i32 = arith.constant 0 : i32
    %c0_i32_0 = arith.constant 0 : i32
    %c0_i32_1 = arith.constant 0 : i32
    return %c0_i32, %c0_i32_0 : i32, i32
  }
  func.func @transform_4(%arg0: i32) -> (i32, i32) {
    %c0_i32 = arith.constant 0 : i32
    %c0_i32_0 = arith.constant 0 : i32
    return %arg0, %c0_i32 : i32, i32
  }
}

</mosaic_0001>

<llo_original>
// kernel: tpu_custom_call.1
$region0: #{tpu_custom_call.1}
  #allocation0 [shape = 'u32[]', space=smem, size = 0x4, offset = 0x4, fixed_abs, tag = 'smem constant byte address 0x4 - core index']
  #allocation1 [shape = 'u32[144,128]{1,0:T(1,128)}', space=vmem, size = 0x12000, scoped, tag = 'internal scratch']
  %s0 = inlined_call_operand.hbm [shape: s32[16,16], index: 0, kind: input, shape index: {}]
  %s1 = inlined_call_operand.hbm [shape: f32[20,32], index: 1, kind: input, shape index: {}]
  %s2 = inlined_call_operand.hbm [shape: f32[32,256], index: 2, kind: input, shape index: {}]
  %s3 = inlined_call_operand.vmem [shape: f32[1,128], index: 3, kind: input, shape index: {}]
  %s4 = inlined_call_operand.hbm [shape: f32[16,128], index: 4, kind: output, shape index: {}]
  %s5 = sld [smem:[#allocation0]]
  $region61: #{tpu_custom_call.1} parent=0
    _
  %s7 = ssub.s32 1, %s5
  %s8 = scalar_select 0, %s7, %s5
  $region1: #{tpu_custom_call.1} parent=0
    #allocation2 [shape = 'u8[8192]{0}', space=vmem, size = 0x2000, scoped, tag = 'input window, operand 0']
    #allocation3 [shape = 's32[2]{0}', space=sflag, size = 0x8, scoped, tag = 'scoped memory for tpu_custom_call.1']
    #allocation4 [shape = 's32[2]{0}', space=sflag, size = 0x8, scoped, tag = 'scoped memory for tpu_custom_call.1']
    #allocation5 [shape = 'u8[12288]{0}', space=vmem, size = 0x3000, scoped, tag = 'input window, operand 1, single buffered']
    #allocation6 [shape = 's32[1]{0}', space=sflag, size = 0x4, scoped, tag = 'scoped memory for tpu_custom_call.1']
    #allocation7 [shape = 'u8[32768]{0}', space=vmem, size = 0x8000, scoped, tag = 'input window, operand 2, single buffered']
    #allocation8 [shape = 'u8[8192]{0}', space=vmem, size = 0x2000, scoped, tag = 'output window, operand 0']
    %9 = vsyncpa [#allocation3], 0
    %s10 = scalar_lea.sflag [#allocation3], 1
    %11 = vsyncpa %s10, 0
    %12 = vsyncpa [#allocation6], 0
    %13 = vsyncpa [#allocation4], 0
    %s14 = scalar_lea.sflag [#allocation4], 1
    %15 = vsyncpa %s14, 0
    loop: start=0, step=1, limit=4
    $region2: #{tpu_custom_call.1} parent=1 // loop_pre_header
      _
    $region3: #{tpu_custom_call.1} parent=1 // loop_header
      %s17 = sphi 0, %s21
      %p18 = scmp.ge.s32.totalorder %s17, 4
      %s27 = sphi 0, %s29
      %s30 = sphi 0, %s27
      %s31 = sphi 0, %s30
      %s47 = sphi 0, %s31
      %s51 = sphi 0, %s51
      %s53 = sphi 0, %s51
      %s54 = sphi 0, %s53
      %s68 = sphi 0, %s54
      %s72 = sphi 0, %s72
      %s74 = sphi 0, %s72
      %s75 = sphi 0, %s74
      %s89 = sphi 0, %s75
      %s93 = sphi 0, %s93
      %s95 = sphi 0, %s93
      %s96 = sphi 0, %s95
      %s110 = sphi 0, %s96
      %s116 = sphi 0, %s118
      %s119 = sphi 0, %s116
      %s120 = sphi 0, %s119
      %s136 = sphi 0, %s120
    $region4: #{tpu_custom_call.1} parent=1 // loop_header_branch
      %20 = sbr.rel (%p18) target = $region8
    $region5: #{tpu_custom_call.1} parent=1 // loop_body
      %s22 = ssub.s32 %s17, 1
      %s23 = ssub.s32 %s17, 2
      %s24 = sadd.s32 %s17, 1
      %s25 = ssub.s32 %s17, %s24
      %p26 = scmp.eq.s32.totalorder %s25, 0
      %s28 = sadd.s32 %s27, 1
      %s29 = scalar_select %p26, %s27, %s28
      %p32 = pneg %p26
      %p33 = scmp.eq.s32.totalorder %s17, 1
      %p34 = por %p32, %p33
      %p35 = scmp.ne.s32.totalorder %s27, %s30
      %p36 = scmp.eq.s32.totalorder %s17, 0
      %p37 = por %p35, %p36
      %p38 = scmp.ne.s32.totalorder %s27, %s30
      %p39 = scmp.eq.s32.totalorder %s22, 1
      %p40 = por %p38, %p39
      %p41 = scmp.ne.s32.totalorder %s30, %s31
      %p42 = scmp.eq.s32.totalorder %s22, 0
      %p43 = por %p41, %p42
      %p44 = scmp.ne.s32.totalorder %s30, %s31
      %p45 = scmp.eq.s32.totalorder %s23, 1
      %p46 = por %p44, %p45
      %p48 = scmp.ne.s32.totalorder %s31, %s47
      %p49 = scmp.eq.s32.totalorder %s23, 0
      %p50 = por %p48, %p49
      %s52 = sadd.s32 %s51, 1
      %p55 = scmp.eq.s32.totalorder %s17, 1
      %p56 = scmp.ne.s32.totalorder %s51, %s53
      %p57 = scmp.eq.s32.totalorder %s17, 0
      %p58 = por %p56, %p57
      %p59 = scmp.ne.s32.totalorder %s51, %s53
      %p60 = scmp.eq.s32.totalorder %s22, 1
      %p61 = por %p59, %p60
      %p62 = scmp.ne.s32.totalorder %s53, %s54
      %p63 = scmp.eq.s32.totalorder %s22, 0
      %p64 = por %p62, %p63
      %p65 = scmp.ne.s32.totalorder %s53, %s54
      %p66 = scmp.eq.s32.totalorder %s23, 1
      %p67 = por %p65, %p66
      %p69 = scmp.ne.s32.totalorder %s54, %s68
      %p70 = scmp.eq.s32.totalorder %s23, 0
      %p71 = por %p69, %p70
      %s73 = sadd.s32 %s72, 1
      %p76 = scmp.eq.s32.totalorder %s17, 1
      %p77 = scmp.ne.s32.totalorder %s72, %s74
      %p78 = scmp.eq.s32.totalorder %s17, 0
      %p79 = por %p77, %p78
      %p80 = scmp.ne.s32.totalorder %s72, %s74
      %p81 = scmp.eq.s32.totalorder %s22, 1
      %p82 = por %p80, %p81
      %p83 = scmp.ne.s32.totalorder %s74, %s75
      %p84 = scmp.eq.s32.totalorder %s22, 0
      %p85 = por %p83, %p84
      %p86 = scmp.ne.s32.totalorder %s74, %s75
      %p87 = scmp.eq.s32.totalorder %s23, 1
      %p88 = por %p86, %p87
      %p90 = scmp.ne.s32.totalorder %s75, %s89
      %p91 = scmp.eq.s32.totalorder %s23, 0
      %p92 = por %p90, %p91
      %s94 = sadd.s32 %s93, 1
      %p97 = scmp.eq.s32.totalorder %s17, 1
      %p98 = scmp.ne.s32.totalorder %s93, %s95
      %p99 = scmp.eq.s32.totalorder %s17, 0
      %p100 = por %p98, %p99
      %p101 = scmp.ne.s32.totalorder %s93, %s95
      %p102 = scmp.eq.s32.totalorder %s22, 1
      %p103 = por %p101, %p102
      %p104 = scmp.ne.s32.totalorder %s95, %s96
      %p105 = scmp.eq.s32.totalorder %s22, 0
      %p106 = por %p104, %p105
      %p107 = scmp.ne.s32.totalorder %s95, %s96
      %p108 = scmp.eq.s32.totalorder %s23, 1
      %p109 = por %p107, %p108
      %p111 = scmp.ne.s32.totalorder %s96, %s110
      %p112 = scmp.eq.s32.totalorder %s23, 0
      %p113 = por %p111, %p112
      %s114 = ssub.s32 %s17, %s24
      %p115 = scmp.eq.s32.totalorder %s114, 0
      %s117 = sadd.s32 %s116, 1
      %s118 = scalar_select %p115, %s116, %s117
      %p121 = pneg %p115
      %p122 = scmp.eq.s32.totalorder %s17, 1
      %p123 = por %p121, %p122
      %p124 = scmp.ne.s32.totalorder %s116, %s119
      %p125 = scmp.eq.s32.totalorder %s17, 0
      %p126 = por %p124, %p125
      %p127 = scmp.ne.s32.totalorder %s116, %s119
      %p128 = scmp.eq.s32.totalorder %s22, 1
      %p129 = por %p127, %p128
      %p130 = scmp.ne.s32.totalorder %s119, %s120
      %p131 = scmp.eq.s32.totalorder %s22, 0
      %p132 = por %p130, %p131
      %p133 = scmp.ne.s32.totalorder %s119, %s120
      %p134 = scmp.eq.s32.totalorder %s23, 1
      %p135 = por %p133, %p134
      %p137 = scmp.ne.s32.totalorder %s120, %s136
      %p138 = scmp.eq.s32.totalorder %s23, 0
      %p139 = por %p137, %p138
      %p140 = scmp.le.s32.totalorder 1, %s17
      %p141 = scmp.lt.s32.totalorder %s17, 3
      %p142 = pnand %p140, %p141
      %p143 = pneg %p142
      // Predicated region
      $region9: #{tpu_custom_call.1} parent=5 // pred_check
        _
      $region10: #{tpu_custom_call.1} parent=5 // pred_check_branch
        %145 = sbr.rel (%p142) target = $region12
      $region11: #{tpu_custom_call.1} parent=5 // pred_region
        %s146 = ssub.s32 %s17, 1
        // Predicated region
        $region13: #{tpu_custom_call.1} parent=11 // pred_check
          %p147 = pneg %p64
        $region14: #{tpu_custom_call.1} parent=11 // pred_check_branch
          %149 = sbr.rel (%p147) target = $region16
        $region15: #{tpu_custom_call.1} parent=11 // pred_region
          %s151 = ssub.s32 384, 384
          %152 = vsyncadd [#allocation6], %s151
          %s153 = sshll.u32 [#allocation5], 4
          %s154 = int_to_ptr.vmem [resolvable:$true] %s153
          %159 = dma.hbm_to_vmem [thread:$0]  %s1, 384, %s154, [#allocation6], 128, 128, 8
        $region16: #{tpu_custom_call.1} parent=11 // pred_fallthru
          _
        // Predicated region
        $region17: #{tpu_custom_call.1} parent=11 // pred_check
          %p160 = pneg %p85
        $region18: #{tpu_custom_call.1} parent=11 // pred_check_branch
          %162 = sbr.rel (%p160) target = $region20
        $region19: #{tpu_custom_call.1} parent=11 // pred_region
          %s164 = ssub.s32 1024, 1024
          %165 = vsyncadd [#allocation6], %s164
          %s166 = sshll.u32 [#allocation7], 4
          %s167 = int_to_ptr.vmem [resolvable:$true] %s166
          %172 = dma.hbm_to_vmem [thread:$0]  %s2, 1024, %s167, [#allocation6], 256, 256, 16
        $region20: #{tpu_custom_call.1} parent=11 // pred_fallthru
          _
        // Predicated region
        $region21: #{tpu_custom_call.1} parent=11 // pred_check
          %p173 = pneg %p106
        $region22: #{tpu_custom_call.1} parent=11 // pred_check_branch
          %175 = sbr.rel (%p173) target = $region24
        $region23: #{tpu_custom_call.1} parent=11 // pred_region
          _
        $region24: #{tpu_custom_call.1} parent=11 // pred_fallthru
          _
      $region12: #{tpu_custom_call.1} parent=5 // pred_fallthru
        _
      %p176 = scmp.lt.s32.totalorder %s17, 2
      // Predicated region
      $region25: #{tpu_custom_call.1} parent=5 // pred_check
        %p177 = pneg %p176
      $region26: #{tpu_custom_call.1} parent=5 // pred_check_branch
        %179 = sbr.rel (%p177) target = $region28
      $region27: #{tpu_custom_call.1} parent=5 // pred_region
        // Predicated region
        $region29: #{tpu_custom_call.1} parent=27 // pred_check
          %p180 = pneg %p37
        $region30: #{tpu_custom_call.1} parent=27 // pred_check_branch
          %182 = sbr.rel (%p180) target = $region32
        $region31: #{tpu_custom_call.1} parent=27 // pred_region
          %s183 = sand.u32 %s27, 1
          %s184 = scalar_lea.sflag [#allocation3], %s183
          %s185 = sand.u32 %s27, 1
          %s186 = smul.addr %s185, 8
          %s187 = scalar_lea.vmem [#allocation2], %s186
          %s189 = ssub.s32 128, 128
          %190 = vsyncadd %s184, %s189
          %s191 = smul.addr %s17, 128
          %s192 = scalar_lea.hbm %s0, %s191
          %s194 = sshll.u32 %s187, 4
          %s195 = int_to_ptr.vmem [resolvable:$true] %s194
          %197 = dma.hbm_to_vmem [thread:$0]  %s192, 128, %s195, %s184
        $region32: #{tpu_custom_call.1} parent=27 // pred_fallthru
          _
      $region28: #{tpu_custom_call.1} parent=5 // pred_fallthru
        _
      %p198 = scmp.le.s32.totalorder 1, %s17
      %p199 = scmp.lt.s32.totalorder %s17, 3
      %p200 = pnand %p198, %p199
      %p201 = pneg %p200
      // Predicated region
      $region33: #{tpu_custom_call.1} parent=5 // pred_check
        _
      $region34: #{tpu_custom_call.1} parent=5 // pred_check_branch
        %203 = sbr.rel (%p200) target = $region36
      $region35: #{tpu_custom_call.1} parent=5 // pred_region
        %s204 = ssub.s32 %s17, 1
        %s205 = sand.u32 %s30, 1
        %s206 = scalar_lea.sflag [#allocation3], %s205
        %s207 = sand.u32 %s30, 1
        %s208 = smul.addr %s207, 8
        %s209 = scalar_lea.vmem [#allocation2], %s208
        // Predicated region
        $region37: #{tpu_custom_call.1} parent=35 // pred_check
          %p210 = pneg %p43
        $region38: #{tpu_custom_call.1} parent=35 // pred_check_branch
          %212 = sbr.rel (%p210) target = $region40
        $region39: #{tpu_custom_call.1} parent=35 // pred_region
          %213 = dma.done %s206, 128
        $region40: #{tpu_custom_call.1} parent=35 // pred_fallthru
          _
        // Predicated region
        $region41: #{tpu_custom_call.1} parent=35 // pred_check
          %p214 = pneg %p64
        $region42: #{tpu_custom_call.1} parent=35 // pred_check_branch
          %216 = sbr.rel (%p214) target = $region44
        $region43: #{tpu_custom_call.1} parent=35 // pred_region
          %217 = dma.done [#allocation6], 384
        $region44: #{tpu_custom_call.1} parent=35 // pred_fallthru
          _
        // Predicated region
        $region45: #{tpu_custom_call.1} parent=35 // pred_check
          %p218 = pneg %p85
        $region46: #{tpu_custom_call.1} parent=35 // pred_check_branch
          %220 = sbr.rel (%p218) target = $region48
        $region47: #{tpu_custom_call.1} parent=35 // pred_region
          %221 = dma.done [#allocation6], 1024
        $region48: #{tpu_custom_call.1} parent=35 // pred_fallthru
          _
        %s222 = sand.u32 %s30, 1
        %s223 = scalar_lea.sflag [#allocation3], %s222
        %s224 = sand.u32 %s30, 1
        %s225 = smul.addr %s224, 8
        %s226 = scalar_lea.vmem [#allocation2], %s225
        %p227 = pneg %p43
        %p228 = pneg %p40
        %p229 = pneg %p64
        %p230 = pneg %p61
        %p231 = pneg %p85
        %p232 = pneg %p82
        %p233 = pneg %p106
        %p234 = pneg %p103
        %p235 = pneg %p132
        %p236 = pneg %p129
        %s237 = sand.u32 %s119, 1
        %s238 = scalar_lea.sflag [#allocation4], %s237
        %s239 = sand.u32 %s119, 1
        %s240 = smul.addr %s239, 8
        %s241 = scalar_lea.vmem [#allocation8], %s240
        %v242 = vld [vmem:[%s209] sm:$0xff]
        %v243 = vlaneseq
        %v244 = vand.u32 %v243, 127
        %v245 = vlaneseq
        %v246 = vshrl.u32 %v245, 7
        %v247 = vsub.s32 0, %v246
        %v248 = vrot.slane %v242, %v247
        %250 = vbcast.lane.b32.xlu0 %v248, 256
        %v251 = vpop.permute.xlu0 %250
        %s253 = sor.u32 256, 8
        %254 = vbcast.lane.b32.xlu0 %v248, %s253
        %v255 = vpop.permute.xlu0 %254
        %v256 = vlaneseq
        %v257 = vshrl.u32 %v256, 7
        %v258 = vsub.s32 1, %v257
        %v259 = vrot.slane %v242, %v258
        %261 = vbcast.lane.b32.xlu0 %v259, 256
        %v262 = vpop.permute.xlu0 %261
        %s264 = sor.u32 256, 8
        %265 = vbcast.lane.b32.xlu0 %v259, %s264
        %v266 = vpop.permute.xlu0 %265
        %v267 = vlaneseq
        %v268 = vshrl.u32 %v267, 7
        %v269 = vsub.s32 2, %v268
        %v270 = vrot.slane %v242, %v269
        %272 = vbcast.lane.b32.xlu0 %v270, 256
        %v273 = vpop.permute.xlu0 %272
        %s275 = sor.u32 256, 8
        %276 = vbcast.lane.b32.xlu0 %v270, %s275
        %v277 = vpop.permute.xlu0 %276
        %v278 = vlaneseq
        %v279 = vshrl.u32 %v278, 7
        %v280 = vsub.s32 3, %v279
        %v281 = vrot.slane %v242, %v280
        %283 = vbcast.lane.b32.xlu0 %v281, 256
        %v284 = vpop.permute.xlu0 %283
        %s286 = sor.u32 256, 8
        %287 = vbcast.lane.b32.xlu0 %v281, %s286
        %v288 = vpop.permute.xlu0 %287
        %v289 = vlaneseq
        %v290 = vshrl.u32 %v289, 7
        %v291 = vsub.s32 4, %v290
        %v292 = vrot.slane %v242, %v291
        %294 = vbcast.lane.b32.xlu0 %v292, 256
        %v295 = vpop.permute.xlu0 %294
        %s297 = sor.u32 256, 8
        %298 = vbcast.lane.b32.xlu0 %v292, %s297
        %v299 = vpop.permute.xlu0 %298
        %v300 = vlaneseq
        %v301 = vshrl.u32 %v300, 7
        %v302 = vsub.s32 5, %v301
        %v303 = vrot.slane %v242, %v302
        %305 = vbcast.lane.b32.xlu0 %v303, 256
        %v306 = vpop.permute.xlu0 %305
        %s308 = sor.u32 256, 8
        %309 = vbcast.lane.b32.xlu0 %v303, %s308
        %v310 = vpop.permute.xlu0 %309
        %v311 = vlaneseq
        %v312 = vshrl.u32 %v311, 7
        %v313 = vsub.s32 6, %v312
        %v314 = vrot.slane %v242, %v313
        %316 = vbcast.lane.b32.xlu0 %v314, 256
        %v317 = vpop.permute.xlu0 %316
        %s319 = sor.u32 256, 8
        %320 = vbcast.lane.b32.xlu0 %v314, %s319
        %v321 = vpop.permute.xlu0 %320
        %v322 = vlaneseq
        %v323 = vshrl.u32 %v322, 7
        %v324 = vsub.s32 7, %v323
        %v325 = vrot.slane %v242, %v324
        %327 = vbcast.lane.b32.xlu0 %v325, 256
        %v328 = vpop.permute.xlu0 %327
        %s330 = sor.u32 256, 8
        %331 = vbcast.lane.b32.xlu0 %v325, %s330
        %v332 = vpop.permute.xlu0 %331
        %vm333 = vcmp.eq.s32.totalorder %v251, %v244
        %vm334 = vcmp.eq.s32.totalorder %v255, %v244
        %vm335 = vcmp.eq.s32.totalorder %v262, %v244
        %vm336 = vcmp.eq.s32.totalorder %v266, %v244
        %vm337 = vcmp.eq.s32.totalorder %v273, %v244
        %vm338 = vcmp.eq.s32.totalorder %v277, %v244
        %vm339 = vcmp.eq.s32.totalorder %v284, %v244
        %vm340 = vcmp.eq.s32.totalorder %v288, %v244
        %vm341 = vcmp.eq.s32.totalorder %v295, %v244
        %vm342 = vcmp.eq.s32.totalorder %v299, %v244
        %vm343 = vcmp.eq.s32.totalorder %v306, %v244
        %vm344 = vcmp.eq.s32.totalorder %v310, %v244
        %vm345 = vcmp.eq.s32.totalorder %v317, %v244
        %vm346 = vcmp.eq.s32.totalorder %v321, %v244
        %vm347 = vcmp.eq.s32.totalorder %v328, %v244
        %vm348 = vcmp.eq.s32.totalorder %v332, %v244
        %v349 = vsel %vm333, 1, 0
        %v350 = vsel %vm334, 1, 0
        %v351 = vsel %vm335, 1, 0
        %v352 = vsel %vm336, 1, 0
        %v353 = vsel %vm337, 1, 0
        %v354 = vsel %vm338, 1, 0
        %v355 = vsel %vm339, 1, 0
        %v356 = vsel %vm340, 1, 0
        %v357 = vsel %vm341, 1, 0
        %v358 = vsel %vm342, 1, 0
        %v359 = vsel %vm343, 1, 0
        %v360 = vsel %vm344, 1, 0
        %v361 = vsel %vm345, 1, 0
        %v362 = vsel %vm346, 1, 0
        %v363 = vsel %vm347, 1, 0
        %v364 = vsel %vm348, 1, 0
        %v365 = vcvt.s32.f32 %v349
        %v366 = vcvt.s32.f32 %v350
        %v367 = vcvt.s32.f32 %v351
        %v368 = vcvt.s32.f32 %v352
        %v369 = vcvt.s32.f32 %v353
        %v370 = vcvt.s32.f32 %v354
        %v371 = vcvt.s32.f32 %v355
        %v372 = vcvt.s32.f32 %v356
        %v373 = vcvt.s32.f32 %v357
        %v374 = vcvt.s32.f32 %v358
        %v375 = vcvt.s32.f32 %v359
        %v376 = vcvt.s32.f32 %v360
        %v377 = vcvt.s32.f32 %v361
        %v378 = vcvt.s32.f32 %v362
        %v379 = vcvt.s32.f32 %v363
        %v380 = vcvt.s32.f32 %v364
        %v381 = vld [vmem:[#allocation5] sm:$0xff]
        %v382 = vld [vmem:[#allocation5 + $0x8] sm:$0xff]
        %v383 = vld [vmem:[#allocation5 + $0x10] sm:$0xf]
        %vm384 = vcmask 162816
        %v386 = vsel %vm384, %v365, 0
        %v389 = vsel %vm384, %v366, 0
        %v392 = vsel %vm384, %v367, 0
        %v395 = vsel %vm384, %v368, 0
        %v398 = vsel %vm384, %v369, 0
        %v401 = vsel %vm384, %v370, 0
        %v404 = vsel %vm384, %v371, 0
        %v407 = vsel %vm384, %v372, 0
        %v410 = vsel %vm384, %v373, 0
        %v413 = vsel %vm384, %v374, 0
        %v416 = vsel %vm384, %v375, 0
        %v419 = vsel %vm384, %v376, 0
        %v422 = vsel %vm384, %v377, 0
        %v425 = vsel %vm384, %v378, 0
        %v428 = vsel %vm384, %v379, 0
        %v431 = vsel %vm384, %v380, 0
        %vm433 = vcmask 1043456
        %v435 = vsel %vm433, %v383, 0
        %437 = vmatprep.subr.mxu0 0.0
        %438 = vmatpush1.msra.mxu0 0.0
        %439 = vmatprep.subr.mxu0 0.0
        %440 = vmatpush1.msra.mxu0 0.0
        %441 = vmatprep.subr.mxu0 0.0
        %442 = vmatpush1.msra.mxu0 0.0
        %443 = vmatprep.subr.mxu0 0.0
        %444 = vmatpush1.msra.mxu0 0.0
        %445 = vmatprep.subr.mxu0 0.0
        %446 = vmatpush1.msra.mxu0 0.0
        %447 = vmatprep.subr.mxu0 0.0
        %448 = vmatpush1.msra.mxu0 0.0
        %449 = vmatprep.subr.mxu0 0.0
        %450 = vmatpush1.msra.mxu0 0.0
        %451 = vmatprep.subr.mxu0 0.0
        %452 = vmatpush1.msra.mxu0 0.0
        %453 = vmatprep.subr.mxu0 0.0
        %454 = vmatpush1.msra.mxu0 0.0
        %455 = vmatprep.subr.mxu0 0.0
        %456 = vmatpush1.msra.mxu0 0.0
        %457 = vmatprep.subr.mxu0 0.0
        %458 = vmatpush1.msra.mxu0 0.0
        %459 = vmatprep.subr.mxu0 0.0
        %460 = vmatpush1.msra.mxu0 0.0
        %461 = vmatprep.subr.mxu0 0.0
        %462 = vmatpush1.msra.mxu0 0.0
        %463 = vmatprep.subr.mxu0 0.0
        %464 = vmatpush1.msra.mxu0 %v435
        %465 = vmatprep.subr.mxu0 0.0
        %466 = vmatpush1.msra.mxu0 %v382
        %467 = vmatprep.subr.mxu0 0.0
        %468 = vmatpush1.msra.mxu0 %v381
        %469 = vmatprep.subr.mxu0 0.0
        %470 = vmatpush2.msra.mxu0 0.0
        %471 = vmatprep.subr.mxu0 0.0
        %472 = vmatpush2.msra.mxu0 0.0
        %473 = vmatprep.subr.mxu0 0.0
        %474 = vmatpush2.msra.mxu0 0.0
        %475 = vmatprep.subr.mxu0 0.0
        %476 = vmatpush2.msra.mxu0 0.0
        %477 = vmatprep.subr.mxu0 0.0
        %478 = vmatpush2.msra.mxu0 0.0
        %479 = vmatprep.subr.mxu0 0.0
        %480 = vmatpush2.msra.mxu0 0.0
        %481 = vmatprep.subr.mxu0 0.0
        %482 = vmatpush2.msra.mxu0 0.0
        %483 = vmatprep.subr.mxu0 0.0
        %484 = vmatpush2.msra.mxu0 0.0
        %485 = vmatprep.subr.mxu0 0.0
        %486 = vmatpush2.msra.mxu0 0.0
        %487 = vmatprep.subr.mxu0 0.0
        %488 = vmatpush2.msra.mxu0 0.0
        %489 = vmatprep.subr.mxu0 0.0
        %490 = vmatpush2.msra.mxu0 0.0
        %491 = vmatprep.subr.mxu0 0.0
        %492 = vmatpush2.msra.mxu0 0.0
        %493 = vmatprep.subr.mxu0 0.0
        %494 = vmatpush2.msra.mxu0 0.0
        %495 = vmatprep.subr.mxu0 0.0
        %496 = vmatpush2.msra.mxu0 0.0
        %497 = vmatprep.subr.mxu0 0.0
        %498 = vmatpush2.msra.mxu0 0.0
        %499 = vmatprep.subr.mxu0 0.0
        %500 = vmatpush2.msra.mxu0 0.0
        %501 = vmatprep.mubr.f32.mxu0 0.0
        %502 = vmatmul.mubr.f32.gmra.mxu0 %v386
        %v503 = vpop.f32.mrf.mxu0
        %v504 = vadd.f32 0.0, %v503
        %v505 = vpop.f32.mrf.mxu0
        %506 = vmatprep.mubr.f32.mxu0 0.0
        %507 = vmatmul.mubr.f32.gmra.mxu0 %v389
        %v508 = vpop.f32.mrf.mxu0
        %v509 = vadd.f32 0.0, %v508
        %v510 = vpop.f32.mrf.mxu0
        %511 = vmatprep.mubr.f32.mxu0 0.0
        %512 = vmatmul.mubr.f32.gmra.mxu0 %v392
        %v513 = vpop.f32.mrf.mxu0
        %v514 = vadd.f32 0.0, %v513
        %v515 = vpop.f32.mrf.mxu0
        %516 = vmatprep.mubr.f32.mxu0 0.0
        %517 = vmatmul.mubr.f32.gmra.mxu0 %v395
        %v518 = vpop.f32.mrf.mxu0
        %v519 = vadd.f32 0.0, %v518
        %v520 = vpop.f32.mrf.mxu0
        %521 = vmatprep.mubr.f32.mxu0 0.0
        %522 = vmatmul.mubr.f32.gmra.mxu0 %v398
        %v523 = vpop.f32.mrf.mxu0
        %v524 = vadd.f32 0.0, %v523
        %v525 = vpop.f32.mrf.mxu0
        %526 = vmatprep.mubr.f32.mxu0 0.0
        %527 = vmatmul.mubr.f32.gmra.mxu0 %v401
        %v528 = vpop.f32.mrf.mxu0
        %v529 = vadd.f32 0.0, %v528
        %v530 = vpop.f32.mrf.mxu0
        %531 = vmatprep.mubr.f32.mxu0 0.0
        %532 = vmatmul.mubr.f32.gmra.mxu0 %v404
        %v533 = vpop.f32.mrf.mxu0
        %v534 = vadd.f32 0.0, %v533
        %v535 = vpop.f32.mrf.mxu0
        %536 = vmatprep.mubr.f32.mxu0 0.0
        %537 = vmatmul.mubr.f32.gmra.mxu0 %v407
        %v538 = vpop.f32.mrf.mxu0
        %v539 = vadd.f32 0.0, %v538
        %v540 = vpop.f32.mrf.mxu0
        %541 = vmatprep.mubr.f32.mxu0 0.0
        %542 = vmatmul.mubr.f32.gmra.mxu0 %v410
        %v543 = vpop.f32.mrf.mxu0
        %v544 = vadd.f32 0.0, %v543
        %v545 = vpop.f32.mrf.mxu0
        %546 = vmatprep.mubr.f32.mxu0 0.0
        %547 = vmatmul.mubr.f32.gmra.mxu0 %v413
        %v548 = vpop.f32.mrf.mxu0
        %v549 = vadd.f32 0.0, %v548
        %v550 = vpop.f32.mrf.mxu0
        %551 = vmatprep.mubr.f32.mxu0 0.0
        %552 = vmatmul.mubr.f32.gmra.mxu0 %v416
        %v553 = vpop.f32.mrf.mxu0
        %v554 = vadd.f32 0.0, %v553
        %v555 = vpop.f32.mrf.mxu0
        %556 = vmatprep.mubr.f32.mxu0 0.0
        %557 = vmatmul.mubr.f32.gmra.mxu0 %v419
        %v558 = vpop.f32.mrf.mxu0
        %v559 = vadd.f32 0.0, %v558
        %v560 = vpop.f32.mrf.mxu0
        %561 = vmatprep.mubr.f32.mxu0 0.0
        %562 = vmatmul.mubr.f32.gmra.mxu0 %v422
        %v563 = vpop.f32.mrf.mxu0
        %v564 = vadd.f32 0.0, %v563
        %v565 = vpop.f32.mrf.mxu0
        %566 = vmatprep.mubr.f32.mxu0 0.0
        %567 = vmatmul.mubr.f32.gmra.mxu0 %v425
        %v568 = vpop.f32.mrf.mxu0
        %v569 = vadd.f32 0.0, %v568
        %v570 = vpop.f32.mrf.mxu0
        %571 = vmatprep.mubr.f32.mxu0 0.0
        %572 = vmatmul.mubr.f32.gmra.mxu0 %v428
        %v573 = vpop.f32.mrf.mxu0
        %v574 = vadd.f32 0.0, %v573
        %v575 = vpop.f32.mrf.mxu0
        %576 = vmatprep.mubr.f32.mxu0 0.0
        %577 = vmatmul.mubr.f32.gmra.mxu0 %v431
        %v578 = vpop.f32.mrf.mxu0
        %v579 = vadd.f32 0.0, %v578
        %v580 = vpop.f32.mrf.mxu0
        %581 = vdwg.mxu0
        %v582 = vld [vmem:[#allocation7] sm:$0xff]
        %v583 = vld [vmem:[#allocation7 + $0x8] sm:$0xff]
        %v584 = vld [vmem:[#allocation7 + $0x10] sm:$0xff]
        %v585 = vld [vmem:[#allocation7 + $0x18] sm:$0xff]
        %v586 = vld [vmem:[#allocation7 + $0x20] sm:$0xff]
        %v587 = vld [vmem:[#allocation7 + $0x28] sm:$0xff]
        %v588 = vld [vmem:[#allocation7 + $0x30] sm:$0xff]
        %v589 = vld [vmem:[#allocation7 + $0x38] sm:$0xff]
        %vm590 = vcmask 261120
        %v592 = vsel %vm590, %v504, 0
        %v595 = vsel %vm590, %v509, 0
        %v598 = vsel %vm590, %v514, 0
        %v601 = vsel %vm590, %v519, 0
        %v604 = vsel %vm590, %v524, 0
        %v607 = vsel %vm590, %v529, 0
        %v610 = vsel %vm590, %v534, 0
        %v613 = vsel %vm590, %v539, 0
        %v616 = vsel %vm590, %v544, 0
        %v619 = vsel %vm590, %v549, 0
        %v622 = vsel %vm590, %v554, 0
        %v625 = vsel %vm590, %v559, 0
        %v628 = vsel %vm590, %v564, 0
        %v631 = vsel %vm590, %v569, 0
        %v634 = vsel %vm590, %v574, 0
        %v637 = vsel %vm590, %v579, 0
        %639 = vmatprep.subr.mxu0 0.0
        %640 = vmatpush1.msra.mxu0 0.0
        %641 = vmatprep.subr.mxu0 0.0
        %642 = vmatpush1.msra.mxu0 0.0
        %643 = vmatprep.subr.mxu0 0.0
        %644 = vmatpush1.msra.mxu0 0.0
        %645 = vmatprep.subr.mxu0 0.0
        %646 = vmatpush1.msra.mxu0 0.0
        %647 = vmatprep.subr.mxu0 0.0
        %648 = vmatpush1.msra.mxu0 0.0
        %649 = vmatprep.subr.mxu0 0.0
        %650 = vmatpush1.msra.mxu0 0.0
        %651 = vmatprep.subr.mxu0 0.0
        %652 = vmatpush1.msra.mxu0 0.0
        %653 = vmatprep.subr.mxu0 0.0
        %654 = vmatpush1.msra.mxu0 0.0
        %655 = vmatprep.subr.mxu0 0.0
        %656 = vmatpush1.msra.mxu0 0.0
        %657 = vmatprep.subr.mxu0 0.0
        %658 = vmatpush1.msra.mxu0 0.0
        %659 = vmatprep.subr.mxu0 0.0
        %660 = vmatpush1.msra.mxu0 0.0
        %661 = vmatprep.subr.mxu0 0.0
        %662 = vmatpush1.msra.mxu0 0.0
        %663 = vmatprep.subr.mxu0 %v589
        %664 = vmatpush1.msra.mxu0 %v588
        %665 = vmatprep.subr.mxu0 %v587
        %666 = vmatpush1.msra.mxu0 %v586
        %667 = vmatprep.subr.mxu0 %v585
        %668 = vmatpush1.msra.mxu0 %v584
        %669 = vmatprep.subr.mxu0 %v583
        %670 = vmatpush1.msra.mxu0 %v582
        %671 = vmatprep.subr.mxu0 0.0
        %672 = vmatpush2.msra.mxu0 0.0
        %673 = vmatprep.subr.mxu0 0.0
        %674 = vmatpush2.msra.mxu0 0.0
        %675 = vmatprep.subr.mxu0 0.0
        %676 = vmatpush2.msra.mxu0 0.0
        %677 = vmatprep.subr.mxu0 0.0
        %678 = vmatpush2.msra.mxu0 0.0
        %679 = vmatprep.subr.mxu0 0.0
        %680 = vmatpush2.msra.mxu0 0.0
        %681 = vmatprep.subr.mxu0 0.0
        %682 = vmatpush2.msra.mxu0 0.0
        %683 = vmatprep.subr.mxu0 0.0
        %684 = vmatpush2.msra.mxu0 0.0
        %685 = vmatprep.subr.mxu0 0.0
        %686 = vmatpush2.msra.mxu0 0.0
        %687 = vmatprep.subr.mxu0 0.0
        %688 = vmatpush2.msra.mxu0 0.0
        %689 = vmatprep.subr.mxu0 0.0
        %690 = vmatpush2.msra.mxu0 0.0
        %691 = vmatprep.subr.mxu0 0.0
        %692 = vmatpush2.msra.mxu0 0.0
        %693 = vmatprep.subr.mxu0 0.0
        %694 = vmatpush2.msra.mxu0 0.0
        %695 = vmatprep.subr.mxu0 0.0
        %696 = vmatpush2.msra.mxu0 0.0
        %697 = vmatprep.subr.mxu0 0.0
        %698 = vmatpush2.msra.mxu0 0.0
        %699 = vmatprep.subr.mxu0 0.0
        %700 = vmatpush2.msra.mxu0 0.0
        %701 = vmatprep.subr.mxu0 0.0
        %702 = vmatpush2.msra.mxu0 0.0
        %703 = vmatprep.mubr.f32.mxu0 0.0
        %704 = vmatmul.mubr.f32.gmra.mxu0 %v592
        %v705 = vpop.f32.mrf.mxu0
        %v706 = vadd.f32 0.0, %v705
        %v707 = vpop.f32.mrf.mxu0
        %v708 = vadd.f32 0.0, %v707
        %709 = vmatprep.mubr.f32.mxu0 0.0
        %710 = vmatmul.mubr.f32.gmra.mxu0 %v595
        %v711 = vpop.f32.mrf.mxu0
        %v712 = vadd.f32 0.0, %v711
        %v713 = vpop.f32.mrf.mxu0
        %v714 = vadd.f32 0.0, %v713
        %715 = vmatprep.mubr.f32.mxu0 0.0
        %716 = vmatmul.mubr.f32.gmra.mxu0 %v598
        %v717 = vpop.f32.mrf.mxu0
        %v718 = vadd.f32 0.0, %v717
        %v719 = vpop.f32.mrf.mxu0
        %v720 = vadd.f32 0.0, %v719
        %721 = vmatprep.mubr.f32.mxu0 0.0
        %722 = vmatmul.mubr.f32.gmra.mxu0 %v601
        %v723 = vpop.f32.mrf.mxu0
        %v724 = vadd.f32 0.0, %v723
        %v725 = vpop.f32.mrf.mxu0
        %v726 = vadd.f32 0.0, %v725
        %727 = vmatprep.mubr.f32.mxu0 0.0
        %728 = vmatmul.mubr.f32.gmra.mxu0 %v604
        %v729 = vpop.f32.mrf.mxu0
        %v730 = vadd.f32 0.0, %v729
        %v731 = vpop.f32.mrf.mxu0
        %v732 = vadd.f32 0.0, %v731
        %733 = vmatprep.mubr.f32.mxu0 0.0
        %734 = vmatmul.mubr.f32.gmra.mxu0 %v607
        %v735 = vpop.f32.mrf.mxu0
        %v736 = vadd.f32 0.0, %v735
        %v737 = vpop.f32.mrf.mxu0
        %v738 = vadd.f32 0.0, %v737
        %739 = vmatprep.mubr.f32.mxu0 0.0
        %740 = vmatmul.mubr.f32.gmra.mxu0 %v610
        %v741 = vpop.f32.mrf.mxu0
        %v742 = vadd.f32 0.0, %v741
        %v743 = vpop.f32.mrf.mxu0
        %v744 = vadd.f32 0.0, %v743
        %745 = vmatprep.mubr.f32.mxu0 0.0
        %746 = vmatmul.mubr.f32.gmra.mxu0 %v613
        %v747 = vpop.f32.mrf.mxu0
        %v748 = vadd.f32 0.0, %v747
        %v749 = vpop.f32.mrf.mxu0
        %v750 = vadd.f32 0.0, %v749
        %751 = vmatprep.mubr.f32.mxu0 0.0
        %752 = vmatmul.mubr.f32.gmra.mxu0 %v616
        %v753 = vpop.f32.mrf.mxu0
        %v754 = vadd.f32 0.0, %v753
        %v755 = vpop.f32.mrf.mxu0
        %v756 = vadd.f32 0.0, %v755
        %757 = vmatprep.mubr.f32.mxu0 0.0
        %758 = vmatmul.mubr.f32.gmra.mxu0 %v619
        %v759 = vpop.f32.mrf.mxu0
        %v760 = vadd.f32 0.0, %v759
        %v761 = vpop.f32.mrf.mxu0
        %v762 = vadd.f32 0.0, %v761
        %763 = vmatprep.mubr.f32.mxu0 0.0
        %764 = vmatmul.mubr.f32.gmra.mxu0 %v622
        %v765 = vpop.f32.mrf.mxu0
        %v766 = vadd.f32 0.0, %v765
        %v767 = vpop.f32.mrf.mxu0
        %v768 = vadd.f32 0.0, %v767
        %769 = vmatprep.mubr.f32.mxu0 0.0
        %770 = vmatmul.mubr.f32.gmra.mxu0 %v625
        %v771 = vpop.f32.mrf.mxu0
        %v772 = vadd.f32 0.0, %v771
        %v773 = vpop.f32.mrf.mxu0
        %v774 = vadd.f32 0.0, %v773
        %775 = vmatprep.mubr.f32.mxu0 0.0
        %776 = vmatmul.mubr.f32.gmra.mxu0 %v628
        %v777 = vpop.f32.mrf.mxu0
        %v778 = vadd.f32 0.0, %v777
        %v779 = vpop.f32.mrf.mxu0
        %v780 = vadd.f32 0.0, %v779
        %781 = vmatprep.mubr.f32.mxu0 0.0
        %782 = vmatmul.mubr.f32.gmra.mxu0 %v631
        %v783 = vpop.f32.mrf.mxu0
        %v784 = vadd.f32 0.0, %v783
        %v785 = vpop.f32.mrf.mxu0
        %v786 = vadd.f32 0.0, %v785
        %787 = vmatprep.mubr.f32.mxu0 0.0
        %788 = vmatmul.mubr.f32.gmra.mxu0 %v634
        %v789 = vpop.f32.mrf.mxu0
        %v790 = vadd.f32 0.0, %v789
        %v791 = vpop.f32.mrf.mxu0
        %v792 = vadd.f32 0.0, %v791
        %793 = vmatprep.mubr.f32.mxu0 0.0
        %794 = vmatmul.mubr.f32.gmra.mxu0 %v637
        %v795 = vpop.f32.mrf.mxu0
        %v796 = vadd.f32 0.0, %v795
        %v797 = vpop.f32.mrf.mxu0
        %v798 = vadd.f32 0.0, %v797
        %799 = vdwg.mxu0
        %vm816 = vcmask 1046528
        %v817 = vrot.slane %v706, 1
        %v818 = vrot.slane %v712, 1
        %v819 = vsel %vm816, %v817, %v818
        %v820 = vrot.slane %v718, 1
        %v821 = vrot.slane %v724, 1
        %v822 = vsel %vm816, %v820, %v821
        %v823 = vrot.slane %v730, 1
        %v824 = vrot.slane %v736, 1
        %v825 = vsel %vm816, %v823, %v824
        %v826 = vrot.slane %v742, 1
        %v827 = vrot.slane %v748, 1
        %v828 = vsel %vm816, %v826, %v827
        %v829 = vrot.slane %v754, 1
        %v830 = vrot.slane %v760, 1
        %v831 = vsel %vm816, %v829, %v830
        %v832 = vrot.slane %v766, 1
        %v833 = vrot.slane %v772, 1
        %v834 = vsel %vm816, %v832, %v833
        %v835 = vrot.slane %v778, 1
        %v836 = vrot.slane %v784, 1
        %v837 = vsel %vm816, %v835, %v836
        %v838 = vrot.slane %v790, 1
        %v839 = vrot.slane %v796, 1
        %v840 = vsel %vm816, %v838, %v839
        %841 = vrot.lane.b32.xlu0 %v819, 96
        %v842 = vpop.permute.xlu0 %841
        %843 = vrot.lane.b32.xlu0 %v818, 96
        %v844 = vpop.permute.xlu0 %843
        %845 = vrot.lane.b32.xlu0 %v822, 96
        %v846 = vpop.permute.xlu0 %845
        %847 = vrot.lane.b32.xlu0 %v821, 96
        %v848 = vpop.permute.xlu0 %847
        %849 = vrot.lane.b32.xlu0 %v825, 96
        %v850 = vpop.permute.xlu0 %849
        %851 = vrot.lane.b32.xlu0 %v824, 96
        %v852 = vpop.permute.xlu0 %851
        %853 = vrot.lane.b32.xlu0 %v828, 96
        %v854 = vpop.permute.xlu0 %853
        %855 = vrot.lane.b32.xlu0 %v827, 96
        %v856 = vpop.permute.xlu0 %855
        %857 = vrot.lane.b32.xlu0 %v831, 96
        %v858 = vpop.permute.xlu0 %857
        %859 = vrot.lane.b32.xlu0 %v830, 96
        %v860 = vpop.permute.xlu0 %859
        %861 = vrot.lane.b32.xlu0 %v834, 96
        %v862 = vpop.permute.xlu0 %861
        %863 = vrot.lane.b32.xlu0 %v833, 96
        %v864 = vpop.permute.xlu0 %863
        %865 = vrot.lane.b32.xlu0 %v837, 96
        %v866 = vpop.permute.xlu0 %865
        %867 = vrot.lane.b32.xlu0 %v836, 96
        %v868 = vpop.permute.xlu0 %867
        %869 = vrot.lane.b32.xlu0 %v840, 96
        %v870 = vpop.permute.xlu0 %869
        %871 = vrot.lane.b32.xlu0 %v839, 96
        %v872 = vpop.permute.xlu0 %871
        %v889 = vadd.f32 %v706, %v842
        %v890 = vadd.f32 %v712, %v844
        %v891 = vadd.f32 %v718, %v846
        %v892 = vadd.f32 %v724, %v848
        %v893 = vadd.f32 %v730, %v850
        %v894 = vadd.f32 %v736, %v852
        %v895 = vadd.f32 %v742, %v854
        %v896 = vadd.f32 %v748, %v856
        %v897 = vadd.f32 %v754, %v858
        %v898 = vadd.f32 %v760, %v860
        %v899 = vadd.f32 %v766, %v862
        %v900 = vadd.f32 %v772, %v864
        %v901 = vadd.f32 %v778, %v866
        %v902 = vadd.f32 %v784, %v868
        %v903 = vadd.f32 %v790, %v870
        %v904 = vadd.f32 %v796, %v872
        %vm905 = vcmask 1045504
        %v906 = vrot.slane %v706, 2
        %v907 = vrot.slane %v712, 2
        %v908 = vsel %vm905, %v906, %v907
        %v909 = vrot.slane %v718, 2
        %v910 = vrot.slane %v724, 2
        %v911 = vsel %vm905, %v909, %v910
        %v912 = vrot.slane %v730, 2
        %v913 = vrot.slane %v736, 2
        %v914 = vsel %vm905, %v912, %v913
        %v915 = vrot.slane %v742, 2
        %v916 = vrot.slane %v748, 2
        %v917 = vsel %vm905, %v915, %v916
        %v918 = vrot.slane %v754, 2
        %v919 = vrot.slane %v760, 2
        %v920 = vsel %vm905, %v918, %v919
        %v921 = vrot.slane %v766, 2
        %v922 = vrot.slane %v772, 2
        %v923 = vsel %vm905, %v921, %v922
        %v924 = vrot.slane %v778, 2
        %v925 = vrot.slane %v784, 2
        %v926 = vsel %vm905, %v924, %v925
        %v927 = vrot.slane %v790, 2
        %v928 = vrot.slane %v796, 2
        %v929 = vsel %vm905, %v927, %v928
        %930 = vrot.lane.b32.xlu0 %v908, 64
        %v931 = vpop.permute.xlu0 %930
        %932 = vrot.lane.b32.xlu0 %v907, 64
        %v933 = vpop.permute.xlu0 %932
        %934 = vrot.lane.b32.xlu0 %v911, 64
        %v935 = vpop.permute.xlu0 %934
        %936 = vrot.lane.b32.xlu0 %v910, 64
        %v937 = vpop.permute.xlu0 %936
        %938 = vrot.lane.b32.xlu0 %v914, 64
        %v939 = vpop.permute.xlu0 %938
        %940 = vrot.lane.b32.xlu0 %v913, 64
        %v941 = vpop.permute.xlu0 %940
        %942 = vrot.lane.b32.xlu0 %v917, 64
        %v943 = vpop.permute.xlu0 %942
        %944 = vrot.lane.b32.xlu0 %v916, 64
        %v945 = vpop.permute.xlu0 %944
        %946 = vrot.lane.b32.xlu0 %v920, 64
        %v947 = vpop.permute.xlu0 %946
        %948 = vrot.lane.b32.xlu0 %v919, 64
        %v949 = vpop.permute.xlu0 %948
        %950 = vrot.lane.b32.xlu0 %v923, 64
        %v951 = vpop.permute.xlu0 %950
        %952 = vrot.lane.b32.xlu0 %v922, 64
        %v953 = vpop.permute.xlu0 %952
        %954 = vrot.lane.b32.xlu0 %v926, 64
        %v955 = vpop.permute.xlu0 %954
        %956 = vrot.lane.b32.xlu0 %v925, 64
        %v957 = vpop.permute.xlu0 %956
        %958 = vrot.lane.b32.xlu0 %v929, 64
        %v959 = vpop.permute.xlu0 %958
        %960 = vrot.lane.b32.xlu0 %v928, 64
        %v961 = vpop.permute.xlu0 %960
        %v978 = vadd.f32 %v889, %v931
        %v979 = vadd.f32 %v890, %v933
        %v980 = vadd.f32 %v891, %v935
        %v981 = vadd.f32 %v892, %v937
        %v982 = vadd.f32 %v893, %v939
        %v983 = vadd.f32 %v894, %v941
        %v984 = vadd.f32 %v895, %v943
        %v985 = vadd.f32 %v896, %v945
        %v986 = vadd.f32 %v897, %v947
        %v987 = vadd.f32 %v898, %v949
        %v988 = vadd.f32 %v899, %v951
        %v989 = vadd.f32 %v900, %v953
        %v990 = vadd.f32 %v901, %v955
        %v991 = vadd.f32 %v902, %v957
        %v992 = vadd.f32 %v903, %v959
        %v993 = vadd.f32 %v904, %v961
        %v994 = vsel %vm590, %v978, -inf
        %vm995 = vcmask 259072
        %v996 = vsel %vm995, %v979, -inf
        %v997 = vmax.f32 %v994, %v996
        %v998 = vrot.slane %v997, 4
        %v999 = vmax.f32 %v997, %v998
        %v1000 = vrot.slane %v999, 2
        %v1001 = vmax.f32 %v999, %v1000
        %v1002 = vrot.slane %v1001, 1
        %v1003 = vmax.f32 %v1001, %v1002
        %v1004 = vsel %vm590, %v980, -inf
        %v1005 = vsel %vm995, %v981, -inf
        %v1006 = vmax.f32 %v1004, %v1005
        %v1007 = vrot.slane %v1006, 4
        %v1008 = vmax.f32 %v1006, %v1007
        %v1009 = vrot.slane %v1008, 2
        %v1010 = vmax.f32 %v1008, %v1009
        %v1011 = vrot.slane %v1010, 1
        %v1012 = vmax.f32 %v1010, %v1011
        %v1013 = vsel %vm590, %v982, -inf
        %v1014 = vsel %vm995, %v983, -inf
        %v1015 = vmax.f32 %v1013, %v1014
        %v1016 = vrot.slane %v1015, 4
        %v1017 = vmax.f32 %v1015, %v1016
        %v1018 = vrot.slane %v1017, 2
        %v1019 = vmax.f32 %v1017, %v1018
        %v1020 = vrot.slane %v1019, 1
        %v1021 = vmax.f32 %v1019, %v1020
        %v1022 = vsel %vm590, %v984, -inf
        %v1023 = vsel %vm995, %v985, -inf
        %v1024 = vmax.f32 %v1022, %v1023
        %v1025 = vrot.slane %v1024, 4
        %v1026 = vmax.f32 %v1024, %v1025
        %v1027 = vrot.slane %v1026, 2
        %v1028 = vmax.f32 %v1026, %v1027
        %v1029 = vrot.slane %v1028, 1
        %v1030 = vmax.f32 %v1028, %v1029
        %v1031 = vsel %vm590, %v986, -inf
        %v1032 = vsel %vm995, %v987, -inf
        %v1033 = vmax.f32 %v1031, %v1032
        %v1034 = vrot.slane %v1033, 4
        %v1035 = vmax.f32 %v1033, %v1034
        %v1036 = vrot.slane %v1035, 2
        %v1037 = vmax.f32 %v1035, %v1036
        %v1038 = vrot.slane %v1037, 1
        %v1039 = vmax.f32 %v1037, %v1038
        %v1040 = vsel %vm590, %v988, -inf
        %v1041 = vsel %vm995, %v989, -inf
        %v1042 = vmax.f32 %v1040, %v1041
        %v1043 = vrot.slane %v1042, 4
        %v1044 = vmax.f32 %v1042, %v1043
        %v1045 = vrot.slane %v1044, 2
        %v1046 = vmax.f32 %v1044, %v1045
        %v1047 = vrot.slane %v1046, 1
        %v1048 = vmax.f32 %v1046, %v1047
        %v1049 = vsel %vm590, %v990, -inf
        %v1050 = vsel %vm995, %v991, -inf
        %v1051 = vmax.f32 %v1049, %v1050
        %v1052 = vrot.slane %v1051, 4
        %v1053 = vmax.f32 %v1051, %v1052
        %v1054 = vrot.slane %v1053, 2
        %v1055 = vmax.f32 %v1053, %v1054
        %v1056 = vrot.slane %v1055, 1
        %v1057 = vmax.f32 %v1055, %v1056
        %v1058 = vsel %vm590, %v992, -inf
        %v1059 = vsel %vm995, %v993, -inf
        %v1060 = vmax.f32 %v1058, %v1059
        %v1061 = vrot.slane %v1060, 4
        %v1062 = vmax.f32 %v1060, %v1061
        %v1063 = vrot.slane %v1062, 2
        %v1064 = vmax.f32 %v1062, %v1063
        %v1065 = vrot.slane %v1064, 1
        %v1066 = vmax.f32 %v1064, %v1065
        %v1083 = vrot.slane %v708, 1
        %v1084 = vrot.slane %v714, 1
        %v1085 = vsel %vm816, %v1083, %v1084
        %v1086 = vrot.slane %v720, 1
        %v1087 = vrot.slane %v726, 1
        %v1088 = vsel %vm816, %v1086, %v1087
        %v1089 = vrot.slane %v732, 1
        %v1090 = vrot.slane %v738, 1
        %v1091 = vsel %vm816, %v1089, %v1090
        %v1092 = vrot.slane %v744, 1
        %v1093 = vrot.slane %v750, 1
        %v1094 = vsel %vm816, %v1092, %v1093
        %v1095 = vrot.slane %v756, 1
        %v1096 = vrot.slane %v762, 1
        %v1097 = vsel %vm816, %v1095, %v1096
        %v1098 = vrot.slane %v768, 1
        %v1099 = vrot.slane %v774, 1
        %v1100 = vsel %vm816, %v1098, %v1099
        %v1101 = vrot.slane %v780, 1
        %v1102 = vrot.slane %v786, 1
        %v1103 = vsel %vm816, %v1101, %v1102
        %v1104 = vrot.slane %v792, 1
        %v1105 = vrot.slane %v798, 1
        %v1106 = vsel %vm816, %v1104, %v1105
        %1107 = vrot.lane.b32.xlu0 %v1085, 96
        %v1108 = vpop.permute.xlu0 %1107
        %1109 = vrot.lane.b32.xlu0 %v1084, 96
        %v1110 = vpop.permute.xlu0 %1109
        %1111 = vrot.lane.b32.xlu0 %v1088, 96
        %v1112 = vpop.permute.xlu0 %1111
        %1113 = vrot.lane.b32.xlu0 %v1087, 96
        %v1114 = vpop.permute.xlu0 %1113
        %1115 = vrot.lane.b32.xlu0 %v1091, 96
        %v1116 = vpop.permute.xlu0 %1115
        %1117 = vrot.lane.b32.xlu0 %v1090, 96
        %v1118 = vpop.permute.xlu0 %1117
        %1119 = vrot.lane.b32.xlu0 %v1094, 96
        %v1120 = vpop.permute.xlu0 %1119
        %1121 = vrot.lane.b32.xlu0 %v1093, 96
        %v1122 = vpop.permute.xlu0 %1121
        %1123 = vrot.lane.b32.xlu0 %v1097, 96
        %v1124 = vpop.permute.xlu0 %1123
        %1125 = vrot.lane.b32.xlu0 %v1096, 96
        %v1126 = vpop.permute.xlu0 %1125
        %1127 = vrot.lane.b32.xlu0 %v1100, 96
        %v1128 = vpop.permute.xlu0 %1127
        %1129 = vrot.lane.b32.xlu0 %v1099, 96
        %v1130 = vpop.permute.xlu0 %1129
        %1131 = vrot.lane.b32.xlu0 %v1103, 96
        %v1132 = vpop.permute.xlu0 %1131
        %1133 = vrot.lane.b32.xlu0 %v1102, 96
        %v1134 = vpop.permute.xlu0 %1133
        %1135 = vrot.lane.b32.xlu0 %v1106, 96
        %v1136 = vpop.permute.xlu0 %1135
        %1137 = vrot.lane.b32.xlu0 %v1105, 96
        %v1138 = vpop.permute.xlu0 %1137
        %v1155 = vadd.f32 %v706, %v1108
        %v1156 = vadd.f32 %v712, %v1110
        %v1157 = vadd.f32 %v718, %v1112
        %v1158 = vadd.f32 %v724, %v1114
        %v1159 = vadd.f32 %v730, %v1116
        %v1160 = vadd.f32 %v736, %v1118
        %v1161 = vadd.f32 %v742, %v1120
        %v1162 = vadd.f32 %v748, %v1122
        %v1163 = vadd.f32 %v754, %v1124
        %v1164 = vadd.f32 %v760, %v1126
        %v1165 = vadd.f32 %v766, %v1128
        %v1166 = vadd.f32 %v772, %v1130
        %v1167 = vadd.f32 %v778, %v1132
        %v1168 = vadd.f32 %v784, %v1134
        %v1169 = vadd.f32 %v790, %v1136
        %v1170 = vadd.f32 %v796, %v1138
        %v1171 = vrot.slane %v708, 2
        %v1172 = vrot.slane %v714, 2
        %v1173 = vsel %vm905, %v1171, %v1172
        %v1174 = vrot.slane %v720, 2
        %v1175 = vrot.slane %v726, 2
        %v1176 = vsel %vm905, %v1174, %v1175
        %v1177 = vrot.slane %v732, 2
        %v1178 = vrot.slane %v738, 2
        %v1179 = vsel %vm905, %v1177, %v1178
        %v1180 = vrot.slane %v744, 2
        %v1181 = vrot.slane %v750, 2
        %v1182 = vsel %vm905, %v1180, %v1181
        %v1183 = vrot.slane %v756, 2
        %v1184 = vrot.slane %v762, 2
        %v1185 = vsel %vm905, %v1183, %v1184
        %v1186 = vrot.slane %v768, 2
        %v1187 = vrot.slane %v774, 2
        %v1188 = vsel %vm905, %v1186, %v1187
        %v1189 = vrot.slane %v780, 2
        %v1190 = vrot.slane %v786, 2
        %v1191 = vsel %vm905, %v1189, %v1190
        %v1192 = vrot.slane %v792, 2
        %v1193 = vrot.slane %v798, 2
        %v1194 = vsel %vm905, %v1192, %v1193
        %1195 = vrot.lane.b32.xlu0 %v1173, 64
        %v1196 = vpop.permute.xlu0 %1195
        %1197 = vrot.lane.b32.xlu0 %v1172, 64
        %v1198 = vpop.permute.xlu0 %1197
        %1199 = vrot.lane.b32.xlu0 %v1176, 64
        %v1200 = vpop.permute.xlu0 %1199
        %1201 = vrot.lane.b32.xlu0 %v1175, 64
        %v1202 = vpop.permute.xlu0 %1201
        %1203 = vrot.lane.b32.xlu0 %v1179, 64
        %v1204 = vpop.permute.xlu0 %1203
        %1205 = vrot.lane.b32.xlu0 %v1178, 64
        %v1206 = vpop.permute.xlu0 %1205
        %1207 = vrot.lane.b32.xlu0 %v1182, 64
        %v1208 = vpop.permute.xlu0 %1207
        %1209 = vrot.lane.b32.xlu0 %v1181, 64
        %v1210 = vpop.permute.xlu0 %1209
        %1211 = vrot.lane.b32.xlu0 %v1185, 64
        %v1212 = vpop.permute.xlu0 %1211
        %1213 = vrot.lane.b32.xlu0 %v1184, 64
        %v1214 = vpop.permute.xlu0 %1213
        %1215 = vrot.lane.b32.xlu0 %v1188, 64
        %v1216 = vpop.permute.xlu0 %1215
        %1217 = vrot.lane.b32.xlu0 %v1187, 64
        %v1218 = vpop.permute.xlu0 %1217
        %1219 = vrot.lane.b32.xlu0 %v1191, 64
        %v1220 = vpop.permute.xlu0 %1219
        %1221 = vrot.lane.b32.xlu0 %v1190, 64
        %v1222 = vpop.permute.xlu0 %1221
        %1223 = vrot.lane.b32.xlu0 %v1194, 64
        %v1224 = vpop.permute.xlu0 %1223
        %1225 = vrot.lane.b32.xlu0 %v1193, 64
        %v1226 = vpop.permute.xlu0 %1225
        %v1243 = vadd.f32 %v1155, %v1196
        %v1244 = vadd.f32 %v1156, %v1198
        %v1245 = vadd.f32 %v1157, %v1200
        %v1246 = vadd.f32 %v1158, %v1202
        %v1247 = vadd.f32 %v1159, %v1204
        %v1248 = vadd.f32 %v1160, %v1206
        %v1249 = vadd.f32 %v1161, %v1208
        %v1250 = vadd.f32 %v1162, %v1210
        %v1251 = vadd.f32 %v1163, %v1212
        %v1252 = vadd.f32 %v1164, %v1214
        %v1253 = vadd.f32 %v1165, %v1216
        %v1254 = vadd.f32 %v1166, %v1218
        %v1255 = vadd.f32 %v1167, %v1220
        %v1256 = vadd.f32 %v1168, %v1222
        %v1257 = vadd.f32 %v1169, %v1224
        %v1258 = vadd.f32 %v1170, %v1226
        %vm1259 = vcmask 1044480
        %v1260 = vrot.slane %v708, 3
        %v1261 = vrot.slane %v714, 3
        %v1262 = vsel %vm1259, %v1260, %v1261
        %v1263 = vrot.slane %v720, 3
        %v1264 = vrot.slane %v726, 3
        %v1265 = vsel %vm1259, %v1263, %v1264
        %v1266 = vrot.slane %v732, 3
        %v1267 = vrot.slane %v738, 3
        %v1268 = vsel %vm1259, %v1266, %v1267
        %v1269 = vrot.slane %v744, 3
        %v1270 = vrot.slane %v750, 3
        %v1271 = vsel %vm1259, %v1269, %v1270
        %v1272 = vrot.slane %v756, 3
        %v1273 = vrot.slane %v762, 3
        %v1274 = vsel %vm1259, %v1272, %v1273
        %v1275 = vrot.slane %v768, 3
        %v1276 = vrot.slane %v774, 3
        %v1277 = vsel %vm1259, %v1275, %v1276
        %v1278 = vrot.slane %v780, 3
        %v1279 = vrot.slane %v786, 3
        %v1280 = vsel %vm1259, %v1278, %v1279
        %v1281 = vrot.slane %v792, 3
        %v1282 = vrot.slane %v798, 3
        %v1283 = vsel %vm1259, %v1281, %v1282
        %1284 = vrot.lane.b32.xlu0 %v1262, 32
        %v1285 = vpop.permute.xlu0 %1284
        %1286 = vrot.lane.b32.xlu0 %v1261, 32
        %v1287 = vpop.permute.xlu0 %1286
        %1288 = vrot.lane.b32.xlu0 %v1265, 32
        %v1289 = vpop.permute.xlu0 %1288
        %1290 = vrot.lane.b32.xlu0 %v1264, 32
        %v1291 = vpop.permute.xlu0 %1290
        %1292 = vrot.lane.b32.xlu0 %v1268, 32
        %v1293 = vpop.permute.xlu0 %1292
        %1294 = vrot.lane.b32.xlu0 %v1267, 32
        %v1295 = vpop.permute.xlu0 %1294
        %1296 = vrot.lane.b32.xlu0 %v1271, 32
        %v1297 = vpop.permute.xlu0 %1296
        %1298 = vrot.lane.b32.xlu0 %v1270, 32
        %v1299 = vpop.permute.xlu0 %1298
        %1300 = vrot.lane.b32.xlu0 %v1274, 32
        %v1301 = vpop.permute.xlu0 %1300
        %1302 = vrot.lane.b32.xlu0 %v1273, 32
        %v1303 = vpop.permute.xlu0 %1302
        %1304 = vrot.lane.b32.xlu0 %v1277, 32
        %v1305 = vpop.permute.xlu0 %1304
        %1306 = vrot.lane.b32.xlu0 %v1276, 32
        %v1307 = vpop.permute.xlu0 %1306
        %1308 = vrot.lane.b32.xlu0 %v1280, 32
        %v1309 = vpop.permute.xlu0 %1308
        %1310 = vrot.lane.b32.xlu0 %v1279, 32
        %v1311 = vpop.permute.xlu0 %1310
        %1312 = vrot.lane.b32.xlu0 %v1283, 32
        %v1313 = vpop.permute.xlu0 %1312
        %1314 = vrot.lane.b32.xlu0 %v1282, 32
        %v1315 = vpop.permute.xlu0 %1314
        %v1332 = vadd.f32 %v1243, %v1285
        %v1333 = vadd.f32 %v1244, %v1287
        %v1334 = vadd.f32 %v1245, %v1289
        %v1335 = vadd.f32 %v1246, %v1291
        %v1336 = vadd.f32 %v1247, %v1293
        %v1337 = vadd.f32 %v1248, %v1295
        %v1338 = vadd.f32 %v1249, %v1297
        %v1339 = vadd.f32 %v1250, %v1299
        %v1340 = vadd.f32 %v1251, %v1301
        %v1341 = vadd.f32 %v1252, %v1303
        %v1342 = vadd.f32 %v1253, %v1305
        %v1343 = vadd.f32 %v1254, %v1307
        %v1344 = vadd.f32 %v1255, %v1309
        %v1345 = vadd.f32 %v1256, %v1311
        %v1346 = vadd.f32 %v1257, %v1313
        %v1347 = vadd.f32 %v1258, %v1315
        %v1348 = vrot.slane %v708, 4
        %v1349 = vrot.slane %v714, 4
        %v1350 = vsel %vm433, %v1348, %v1349
        %v1351 = vrot.slane %v720, 4
        %v1352 = vrot.slane %v726, 4
        %v1353 = vsel %vm433, %v1351, %v1352
        %v1354 = vrot.slane %v732, 4
        %v1355 = vrot.slane %v738, 4
        %v1356 = vsel %vm433, %v1354, %v1355
        %v1357 = vrot.slane %v744, 4
        %v1358 = vrot.slane %v750, 4
        %v1359 = vsel %vm433, %v1357, %v1358
        %v1360 = vrot.slane %v756, 4
        %v1361 = vrot.slane %v762, 4
        %v1362 = vsel %vm433, %v1360, %v1361
        %v1363 = vrot.slane %v768, 4
        %v1364 = vrot.slane %v774, 4
        %v1365 = vsel %vm433, %v1363, %v1364
        %v1366 = vrot.slane %v780, 4
        %v1367 = vrot.slane %v786, 4
        %v1368 = vsel %vm433, %v1366, %v1367
        %v1369 = vrot.slane %v792, 4
        %v1370 = vrot.slane %v798, 4
        %v1371 = vsel %vm433, %v1369, %v1370
        %v1388 = vadd.f32 %v1332, %v1350
        %v1389 = vadd.f32 %v1333, %v1349
        %v1390 = vadd.f32 %v1334, %v1353
        %v1391 = vadd.f32 %v1335, %v1352
        %v1392 = vadd.f32 %v1336, %v1356
        %v1393 = vadd.f32 %v1337, %v1355
        %v1394 = vadd.f32 %v1338, %v1359
        %v1395 = vadd.f32 %v1339, %v1358
        %v1396 = vadd.f32 %v1340, %v1362
        %v1397 = vadd.f32 %v1341, %v1361
        %v1398 = vadd.f32 %v1342, %v1365
        %v1399 = vadd.f32 %v1343, %v1364
        %v1400 = vadd.f32 %v1344, %v1368
        %v1401 = vadd.f32 %v1345, %v1367
        %v1402 = vadd.f32 %v1346, %v1371
        %v1403 = vadd.f32 %v1347, %v1370
        %vm1404 = vcmask 1048320
        %v1405 = vsel %vm1404, %v1388, -inf
        %vm1406 = vcmask 1044224
        %v1407 = vsel %vm1406, %v1389, -inf
        %v1408 = vmax.f32 %v1405, %v1407
        %v1409 = vrot.slane %v1408, 4
        %v1410 = vmax.f32 %v1408, %v1409
        %v1411 = vrot.slane %v1410, 2
        %v1412 = vmax.f32 %v1410, %v1411
        %v1413 = vrot.slane %v1412, 1
        %v1414 = vmax.f32 %v1412, %v1413
        %v1415 = vsel %vm1404, %v1390, -inf
        %v1416 = vsel %vm1406, %v1391, -inf
        %v1417 = vmax.f32 %v1415, %v1416
        %v1418 = vrot.slane %v1417, 4
        %v1419 = vmax.f32 %v1417, %v1418
        %v1420 = vrot.slane %v1419, 2
        %v1421 = vmax.f32 %v1419, %v1420
        %v1422 = vrot.slane %v1421, 1
        %v1423 = vmax.f32 %v1421, %v1422
        %v1424 = vsel %vm1404, %v1392, -inf
        %v1425 = vsel %vm1406, %v1393, -inf
        %v1426 = vmax.f32 %v1424, %v1425
        %v1427 = vrot.slane %v1426, 4
        %v1428 = vmax.f32 %v1426, %v1427
        %v1429 = vrot.slane %v1428, 2
        %v1430 = vmax.f32 %v1428, %v1429
        %v1431 = vrot.slane %v1430, 1
        %v1432 = vmax.f32 %v1430, %v1431
        %v1433 = vsel %vm1404, %v1394, -inf
        %v1434 = vsel %vm1406, %v1395, -inf
        %v1435 = vmax.f32 %v1433, %v1434
        %v1436 = vrot.slane %v1435, 4
        %v1437 = vmax.f32 %v1435, %v1436
        %v1438 = vrot.slane %v1437, 2
        %v1439 = vmax.f32 %v1437, %v1438
        %v1440 = vrot.slane %v1439, 1
        %v1441 = vmax.f32 %v1439, %v1440
        %v1442 = vsel %vm1404, %v1396, -inf
        %v1443 = vsel %vm1406, %v1397, -inf
        %v1444 = vmax.f32 %v1442, %v1443
        %v1445 = vrot.slane %v1444, 4
        %v1446 = vmax.f32 %v1444, %v1445
        %v1447 = vrot.slane %v1446, 2
        %v1448 = vmax.f32 %v1446, %v1447
        %v1449 = vrot.slane %v1448, 1
        %v1450 = vmax.f32 %v1448, %v1449
        %v1451 = vsel %vm1404, %v1398, -inf
        %v1452 = vsel %vm1406, %v1399, -inf
        %v1453 = vmax.f32 %v1451, %v1452
        %v1454 = vrot.slane %v1453, 4
        %v1455 = vmax.f32 %v1453, %v1454
        %v1456 = vrot.slane %v1455, 2
        %v1457 = vmax.f32 %v1455, %v1456
        %v1458 = vrot.slane %v1457, 1
        %v1459 = vmax.f32 %v1457, %v1458
        %v1460 = vsel %vm1404, %v1400, -inf
        %v1461 = vsel %vm1406, %v1401, -inf
        %v1462 = vmax.f32 %v1460, %v1461
        %v1463 = vrot.slane %v1462, 4
        %v1464 = vmax.f32 %v1462, %v1463
        %v1465 = vrot.slane %v1464, 2
        %v1466 = vmax.f32 %v1464, %v1465
        %v1467 = vrot.slane %v1466, 1
        %v1468 = vmax.f32 %v1466, %v1467
        %v1469 = vsel %vm1404, %v1402, -inf
        %v1470 = vsel %vm1406, %v1403, -inf
        %v1471 = vmax.f32 %v1469, %v1470
        %v1472 = vrot.slane %v1471, 4
        %v1473 = vmax.f32 %v1471, %v1472
        %v1474 = vrot.slane %v1473, 2
        %v1475 = vmax.f32 %v1473, %v1474
        %v1476 = vrot.slane %v1475, 1
        %v1477 = vmax.f32 %v1475, %v1476
        %vm1486 = vcmask 1041409
        %v1487 = vsel %vm1486, %v1012, %v1003
        %vm1488 = vcmask 1042434
        %v1489 = vsel %vm1488, %v1021, %v1487
        %vm1490 = vcmask 1043459
        %v1491 = vsel %vm1490, %v1030, %v1489
        %vm1492 = vcmask 1044484
        %v1493 = vsel %vm1492, %v1039, %v1491
        %vm1494 = vcmask 1045509
        %v1495 = vsel %vm1494, %v1048, %v1493
        %vm1496 = vcmask 1046534
        %v1497 = vsel %vm1496, %v1057, %v1495
        %vm1498 = vcmask 1047559
        %v1499 = vsel %vm1498, %v1066, %v1497
        %v1509 = vsel %vm1486, %v1423, %v1414
        %v1510 = vsel %vm1488, %v1432, %v1509
        %v1511 = vsel %vm1490, %v1441, %v1510
        %v1512 = vsel %vm1492, %v1450, %v1511
        %v1513 = vsel %vm1494, %v1459, %v1512
        %v1514 = vsel %vm1496, %v1468, %v1513
        %v1515 = vsel %vm1498, %v1477, %v1514
        %1516 = vrot.lane.b32.xlu0 %v1515, 64
        %v1517 = vpop.permute.xlu0 %1516
        %v1519 = vsel %vm590, %v1499, %v1517
        %vm1520 = vcmask 523264
        %v1521 = vsel %vm1520, %v1519, 0.0
        %v1522 = vld [vmem:[%s3] sm:$0x1]
        %v1524 = vlaneseq
        %v1525 = vshrl.u32 %v1524, 7
        %v1526 = vsub.s32 0, %v1525
        %v1527 = vrot.slane %v1522, %v1526
        %v1529 = vadd.f32 %v1521, %v1527
        %v1530 = vmax.f32 %v1529, 0.0
        %1531 = vst [vmem:[%s241] sm:$0xff] %v1530
        %s1532 = sand.u32 %s119, 1
        %s1533 = scalar_lea.sflag [#allocation4], %s1532
        %s1534 = sand.u32 %s119, 1
        %s1535 = smul.addr %s1534, 8
        %s1536 = scalar_lea.vmem [#allocation8], %s1535
        // Predicated region
        $region49: #{tpu_custom_call.1} parent=35 // pred_check
          %p1537 = pneg %p129
        $region50: #{tpu_custom_call.1} parent=35 // pred_check_branch
          %1539 = sbr.rel (%p1537) target = $region52
        $region51: #{tpu_custom_call.1} parent=35 // pred_region
          %s1541 = ssub.s32 128, 128
          %1542 = vsyncadd %s1533, %s1541
          %s1543 = smul.addr %s22, 128
          %s1544 = scalar_lea.hbm %s4, %s1543
          %s1546 = sshll.u32 %s1536, 4
          %s1547 = int_to_ptr.vmem [resolvable:$true] %s1546
          %1549 = dma.vmem_to_hbm [thread:$0]  %s1547, 128, %s1544, %s1533
        $region52: #{tpu_custom_call.1} parent=35 // pred_fallthru
          _
      $region36: #{tpu_custom_call.1} parent=5 // pred_fallthru
        _
      %p1550 = scmp.le.s32.totalorder 2, %s17
      // Predicated region
      $region53: #{tpu_custom_call.1} parent=5 // pred_check
        %p1551 = pneg %p1550
      $region54: #{tpu_custom_call.1} parent=5 // pred_check_branch
        %1553 = sbr.rel (%p1551) target = $region56
      $region55: #{tpu_custom_call.1} parent=5 // pred_region
        %s1554 = ssub.s32 %s17, 2
        // Predicated region
        $region57: #{tpu_custom_call.1} parent=55 // pred_check
          %p1555 = pneg %p135
        $region58: #{tpu_custom_call.1} parent=55 // pred_check_branch
          %1557 = sbr.rel (%p1555) target = $region60
        $region59: #{tpu_custom_call.1} parent=55 // pred_region
          %s1558 = sand.u32 %s120, 1
          %s1559 = scalar_lea.sflag [#allocation4], %s1558
          %s1560 = sand.u32 %s120, 1
          %s1561 = smul.addr %s1560, 8
          %s1562 = scalar_lea.vmem [#allocation8], %s1561
          %1563 = dma.done %s1559, 128
        $region60: #{tpu_custom_call.1} parent=55 // pred_fallthru
          _
      $region56: #{tpu_custom_call.1} parent=5 // pred_fallthru
        _
    $region6: #{tpu_custom_call.1} parent=1 // loop_footer
      %s21 = sadd.s32 1, %s17
    $region7: #{tpu_custom_call.1} parent=1 // loop_footer_branch
      %16 = sbr.rel target = $region3
    $region8: #{tpu_custom_call.1} parent=1 // loop_exit
      _
    %1564 = vsyncpa [#allocation3], 1
    %s1565 = scalar_lea.sflag [#allocation3], 1
    %1566 = vsyncpa %s1565, 1
    %1567 = vsyncpa [#allocation6], 1
    %1568 = vsyncpa [#allocation4], 1
    %s1569 = scalar_lea.sflag [#allocation4], 1
    %1570 = vsyncpa %s1569, 1

</llo_original>
